<compile_context>
chip_gen: v5e
topology: v5e:2x2
jax: 0.10.0
libtpu: 0.0.40
codegen_flags: <defaults>
</compile_context>

<pallas_src>
import jax
import jax.numpy as jnp
from jax.experimental import pallas as pl
from jax.experimental.pallas import tpu as pltpu


def dot_attention_kernel(enc_ref, q_ref, neg_mask_ref, ctx_ref, sc_ref):
    # enc_ref      : (TB, S, E)  encoder outputs, native dtype (the HBM stream)
    # q_ref        : (TB, 1, E)  precomputed query = hidden[-1] @ W, enc dtype
    # neg_mask_ref : (TB, 1, S)  f32; 0.0 = keep, -1e10 = masked position
    # ctx_ref      : (TB, 1, E)  output: attn @ enc
    # sc_ref       : (TB, 1, S)  output: post-softmax attention scores
    enc = enc_ref[...]                 # native dtype, fed straight to the MXU
    q = q_ref[...]
    neg_mask = neg_mask_ref[...]

    # scores[b, 0, s] = sum_e q[b, 0, e] * enc[b, s, e]   (batched MXU matmul, NT)
    scores = jnp.einsum('bqe,bse->bqs', q, enc,
                        preferred_element_type=jnp.float32)      # (TB, 1, S) f32

    # masked_fill(mask == 0, -1e10): exact replace (not add) so fully-masked
    # rows degenerate to a uniform distribution, identical to the reference.
    scores = jnp.where(neg_mask < 0, neg_mask, scores)

    # softmax over the sequence (lane) axis
    m = jnp.max(scores, axis=-1, keepdims=True)
    e = jnp.exp(scores - m)
    denom = jnp.sum(e, axis=-1, keepdims=True)
    attn = e * pl.reciprocal(denom, approx=False)                # (TB, 1, S) f32

    # ctx[b, 0, e] = sum_s attn[b, 0, s] * enc[b, s, e]   (batched MXU matmul, NN)
    # attn stays f32 when enc is f32; only quantized when enc itself is narrow.
    ctx = jnp.einsum('bqs,bse->bqe', attn.astype(enc.dtype), enc,
                     preferred_element_type=jnp.float32)         # (TB, 1, E) f32

    ctx_ref[...] = ctx.astype(ctx_ref.dtype)
    sc_ref[...] = attn.astype(sc_ref.dtype)


def _vmem_capacity_bytes():
    try:
        return int(getattr(pltpu.get_tpu_info(), "vmem_capacity_bytes", 64 << 20))
    except Exception:
        return 64 << 20          # conservative (v7x per-TC figure)


def _plan_tiles(B, S, E, itemsize):
    """Pick batch tile TB and a generation-aware vmem_limit_bytes."""
    vmem_cap = _vmem_capacity_bytes()
    # ~half of physical VMEM as the scoped limit: 32 MiB on v7x (64 MiB/TC),
    # 64 MiB on v5e/v6e (128 MiB), capped at 96 MiB.
    vmem_limit = int(max(32 << 20, min(vmem_cap // 2, 96 << 20)))
    # enc block target: big enough to sit in the ~85%-of-HBM-roofline slab
    # band, small enough that 2x double-buffering + outputs fit comfortably.
    enc_budget = min(8 << 20, vmem_limit // 5)
    row_bytes = max(1, S * E * itemsize)

    tb = None
    for cand in (1024, 512, 256, 128, 64, 32, 16, 8):
        if B % cand == 0 and cand * row_bytes <= enc_budget:
            tb = cand
            break
    if tb is None:
        if B * row_bytes <= enc_budget:
            tb = B               # small / irregular batch: one block does it all
        elif B % 8 == 0 and 8 * row_bytes <= enc_budget:
            tb = 8
        else:
            tb = 1
            # TODO(synk): for very large S*E slabs, add a second ("arbitrary")
            # grid axis over S with online-softmax (m, l, acc) VMEM scratch
            # instead of full-S blocks (needed earliest on v7x's 64 MiB VMEM).

    # v7x has two TensorCores: keep >= 2 parallel grid steps when we can do so
    # without dropping below an 8-row batch block.
    if B // tb < 2 and tb % 2 == 0 and tb // 2 >= 8 and B % (tb // 2) == 0:
        tb //= 2
    return tb, vmem_limit


def dot_attention(hidden, encoder_output, mask, weight, bias):
    """Pallas port of DotAttention.forward.

    hidden:         (L, B, D_dec)  -- only hidden[-1] is used
    encoder_output: (B, S, E_enc)
    mask:           (B, S)         -- 0 means masked position
    weight:         (D_dec, E_enc) -- nn.Linear weight
    bias:           (D_dec,)       -- adds a per-batch constant to pre-softmax
                                      scores; cancels exactly in softmax.
    returns (context (B, 1, E_enc), attn_scores (B, S))
    """
    del bias
    B, S, E = encoder_output.shape
    enc_dtype = encoder_output.dtype
    out_dtype = enc_dtype

    # q[b, e] = sum_d hidden[-1][b, d] * W[d, e]  -- one tiny XLA matmul.
    q = jnp.dot(hidden[-1], weight, preferred_element_type=jnp.float32)
    q = q.astype(enc_dtype)[:, None, :]                                 # (B, 1, E)

    # 0.0 = keep, -1e10 = masked; kernel does an exact masked_fill with it.
    neg_mask = jnp.where(mask == 0, jnp.float32(-10000000000.0),
                         jnp.float32(0.0)).astype(jnp.float32)[:, None, :]  # (B,1,S)

    TB, vmem_limit = _plan_tiles(B, S, E, encoder_output.dtype.itemsize)
    grid = (B // TB,)

    # TODO(synk): if production E / S are not multiples of 128, pad/re-layout in
    # the wrapper for lane-dense output stores (only matters for small last dims).
    ctx, sc3 = pl.pallas_call(
        dot_attention_kernel,
        out_shape=(
            jax.ShapeDtypeStruct((B, 1, E), out_dtype),
            jax.ShapeDtypeStruct((B, 1, S), out_dtype),
        ),
        grid=grid,
        in_specs=[
            pl.BlockSpec((TB, S, E), lambda b: (b, 0, 0)),   # enc, native dtype
            pl.BlockSpec((TB, 1, E), lambda b: (b, 0, 0)),   # q
            pl.BlockSpec((TB, 1, S), lambda b: (b, 0, 0)),   # additive-style mask
        ],
        out_specs=(
            pl.BlockSpec((TB, 1, E), lambda b: (b, 0, 0)),   # context
            pl.BlockSpec((TB, 1, S), lambda b: (b, 0, 0)),   # attention scores
        ),
        compiler_params=pltpu.CompilerParams(
            dimension_semantics=("parallel",),
            vmem_limit_bytes=vmem_limit,
        ),
    )(encoder_output, q, neg_mask)

    return ctx, sc3[:, 0, :]


def dot_attention_ref(hidden, encoder_output, mask, weight, bias):
    """Pure-JAX reference mirroring the PyTorch forward exactly."""
    B, S, _ = encoder_output.shape
    hid = jnp.repeat(hidden[-1][:, None, :], S, axis=1)                  # (B, S, D)
    energy = jnp.einsum('bse,de->bsd', encoder_output, weight) + bias    # (B, S, D)
    scores = jnp.sum(energy * hid, axis=-1)                              # (B, S)
    scores = jnp.where(mask == 0, -10000000000.0, scores)
    scores = jax.nn.softmax(scores, axis=-1)
    ctx = jnp.einsum('bs,bse->be', scores, encoder_output)[:, None, :]   # (B, 1, E)
    return ctx, scores


if __name__ == "__main__":
    B, S, L = 2, 8, 2
    ENC_HIDDEN, DEC_HIDDEN = 32, 16

    key = jax.random.PRNGKey(0)
    k_enc, k_hid, k_mask, k_w, k_b = jax.random.split(key, 5)

    encoder_output = jax.random.normal(k_enc, (B, S, ENC_HIDDEN), dtype=jnp.float32)
    hidden = jax.random.normal(k_hid, (L, B, DEC_HIDDEN), dtype=jnp.float32)

    # Binary mask; guarantee at least one unmasked position per row.
    mask = (jax.random.uniform(k_mask, (B, S)) > 0.3).astype(jnp.float32)
    mask = mask.at[:, 0].set(1.0)

    # Deterministic "nn.Linear(enc_hidden, dec_hidden)" params.
    weight = jax.random.normal(k_w, (DEC_HIDDEN, ENC_HIDDEN), dtype=jnp.float32) * 0.1
    bias = jax.random.normal(k_b, (DEC_HIDDEN,), dtype=jnp.float32) * 0.1

    ctx, attn = dot_attention(hidden, encoder_output, mask, weight, bias)
    jax.block_until_ready((ctx, attn))

    ctx_ref, attn_ref = dot_attention_ref(hidden, encoder_output, mask, weight, bias)
    assert ctx.shape == (B, 1, ENC_HIDDEN)
    assert attn.shape == (B, S)
    assert jnp.allclose(ctx, ctx_ref, atol=1e-5, rtol=1e-5)
    assert jnp.allclose(attn, attn_ref, atol=1e-5, rtol=1e-5)

    print("KERNEL_OK")
</pallas_src>

<mosaic_0001>
module attributes {stable_mosaic.version = 11 : i64} {
  func.func @dot_attention_kernel(%arg0: i32, %arg1: memref<2x8x32xf32, #tpu.memory_space<vmem>>, %arg2: memref<2x1x32xf32, #tpu.memory_space<vmem>>, %arg3: memref<2x1x8xf32, #tpu.memory_space<vmem>>, %arg4: memref<2x1x32xf32, #tpu.memory_space<vmem>>, %arg5: memref<2x1x8xf32, #tpu.memory_space<vmem>>) attributes {dimension_semantics = [#tpu.dimension_semantics<parallel>], iteration_bounds = array<i64: 1>, scalar_prefetch = 0 : i64, scratch_operands = 0 : i64, tpu.core_type = #tpu.core_type<tc>, window_params = [{transform_indices = @transform_0, window_bounds = array<i64: 2, 8, 32>}, {transform_indices = @transform_1, window_bounds = array<i64: 2, 1, 32>}, {transform_indices = @transform_2, window_bounds = array<i64: 2, 1, 8>}, {transform_indices = @transform_3, window_bounds = array<i64: 2, 1, 32>}, {transform_indices = @transform_4, window_bounds = array<i64: 2, 1, 8>}]} {
    %c0 = arith.constant 0 : index
    %c0_0 = arith.constant 0 : index
    %c0_1 = arith.constant 0 : index
    %0 = vector.load %arg1[%c0, %c0_0, %c0_1] : memref<2x8x32xf32, #tpu.memory_space<vmem>>, vector<2x8x32xf32>
    %c0_2 = arith.constant 0 : index
    %c0_3 = arith.constant 0 : index
    %c0_4 = arith.constant 0 : index
    %1 = vector.load %arg2[%c0_2, %c0_3, %c0_4] : memref<2x1x32xf32, #tpu.memory_space<vmem>>, vector<2x1x32xf32>
    %c0_5 = arith.constant 0 : index
    %c0_6 = arith.constant 0 : index
    %c0_7 = arith.constant 0 : index
    %2 = vector.load %arg3[%c0_5, %c0_6, %c0_7] : memref<2x1x8xf32, #tpu.memory_space<vmem>>, vector<2x1x8xf32>
    "tpu.trace_start"() <{level = 10 : i32, message = "bqe,bse->bqs"}> : () -> ()
    %cst = arith.constant dense<0.000000e+00> : vector<2x1x8xf32>
    %3 = tpu.matmul %1, %0, %cst {dimension_numbers = #tpu.dot_dimension_numbers<[2], [2], [1], [1], [0, 0, 0, 1, 1, 1], [0], [0]>} : vector<2x1x32xf32>, vector<2x8x32xf32>, vector<2x1x8xf32> -> vector<2x1x8xf32>
    %cst_8 = arith.constant 0.000000e+00 : f32
    "tpu.trace_stop"() : () -> ()
    %4 = vector.broadcast %cst_8 : f32 to vector<2x1x8xf32>
    %5 = arith.cmpf olt, %2, %4 : vector<2x1x8xf32>
    %6 = arith.select %5, %2, %3 : vector<2x1x8xi1>, vector<2x1x8xf32>
    %cst_9 = arith.constant dense<0xFF800000> : vector<2x1xf32>
    %7 = vector.multi_reduction <maximumf>, %6, %cst_9 [2] : vector<2x1x8xf32> to vector<2x1xf32>
    %8 = vector.shape_cast %7 : vector<2x1xf32> to vector<2x1x1xf32>
    %9 = vector.broadcast %8 : vector<2x1x1xf32> to vector<2x1x8xf32>
    %10 = arith.subf %6, %9 : vector<2x1x8xf32>
    %11 = math.exp %10 : vector<2x1x8xf32>
    %cst_10 = arith.constant dense<0.000000e+00> : vector<2x1xf32>
    %12 = vector.multi_reduction <add>, %11, %cst_10 [2] : vector<2x1x8xf32> to vector<2x1xf32>
    %13 = vector.shape_cast %12 : vector<2x1xf32> to vector<2x1x1xf32>
    %14 = tpu.reciprocal %13 : vector<2x1x1xf32> -> vector<2x1x1xf32>
    %15 = vector.broadcast %14 : vector<2x1x1xf32> to vector<2x1x8xf32>
    %16 = arith.mulf %11, %15 : vector<2x1x8xf32>
    "tpu.trace_start"() <{level = 10 : i32, message = "bqs,bse->bqe"}> : () -> ()
    %cst_11 = arith.constant dense<0.000000e+00> : vector<2x1x32xf32>
    %17 = tpu.matmul %16, %0, %cst_11 {dimension_numbers = #tpu.dot_dimension_numbers<[2], [1], [1], [2], [0, 0, 0, 1, 1, 2], [0], [0]>} : vector<2x1x8xf32>, vector<2x8x32xf32>, vector<2x1x32xf32> -> vector<2x1x32xf32>
    "tpu.trace_stop"() : () -> ()
    %c0_12 = arith.constant 0 : index
    %c0_13 = arith.constant 0 : index
    %c0_14 = arith.constant 0 : index
    %18 = vector.load %arg4[%c0_12, %c0_13, %c0_14] : memref<2x1x32xf32, #tpu.memory_space<vmem>>, vector<2x1x32xf32>
    tpu.vector_store %arg4[%c0_12, %c0_13, %c0_14], %17 {strides = array<i32>} : memref<2x1x32xf32, #tpu.memory_space<vmem>>, vector<2x1x32xf32>,
    %c0_15 = arith.constant 0 : index
    %c0_16 = arith.constant 0 : index
    %c0_17 = arith.constant 0 : index
    %19 = vector.load %arg5[%c0_15, %c0_16, %c0_17] : memref<2x1x8xf32, #tpu.memory_space<vmem>>, vector<2x1x8xf32>
    tpu.vector_store %arg5[%c0_15, %c0_16, %c0_17], %16 {strides = array<i32>} : memref<2x1x8xf32, #tpu.memory_space<vmem>>, vector<2x1x8xf32>,
    return
  }
  func.func @transform_0(%arg0: i32) -> (i32, i32, i32) {
    %c0_i32 = arith.constant 0 : i32
    %c0_i32_0 = arith.constant 0 : i32
    %c0_i32_1 = arith.constant 0 : i32
    return %arg0, %c0_i32, %c0_i32_0 : i32, i32, i32
  }
  func.func @transform_1(%arg0: i32) -> (i32, i32, i32) {
    %c0_i32 = arith.constant 0 : i32
    %c0_i32_0 = arith.constant 0 : i32
    %c0_i32_1 = arith.constant 0 : i32
    return %arg0, %c0_i32, %c0_i32_0 : i32, i32, i32
  }
  func.func @transform_2(%arg0: i32) -> (i32, i32, i32) {
    %c0_i32 = arith.constant 0 : i32
    %c0_i32_0 = arith.constant 0 : i32
    %c0_i32_1 = arith.constant 0 : i32
    return %arg0, %c0_i32, %c0_i32_0 : i32, i32, i32
  }
  func.func @transform_3(%arg0: i32) -> (i32, i32, i32) {
    %c0_i32 = arith.constant 0 : i32
    %c0_i32_0 = arith.constant 0 : i32
    %c0_i32_1 = arith.constant 0 : i32
    return %arg0, %c0_i32, %c0_i32_0 : i32, i32, i32
  }
  func.func @transform_4(%arg0: i32) -> (i32, i32, i32) {
    %c0_i32 = arith.constant 0 : i32
    %c0_i32_0 = arith.constant 0 : i32
    %c0_i32_1 = arith.constant 0 : i32
    return %arg0, %c0_i32, %c0_i32_0 : i32, i32, i32
  }
}

</mosaic_0001>

<llo_original>
// kernel: tpu_custom_call.1
$region0: #{tpu_custom_call.1}
  #allocation0 [shape = 'u32[]', space=smem, size = 0x4, offset = 0x4, fixed_abs, tag = 'smem constant byte address 0x4 - core index']
  #allocation1 [shape = 'u32[72,128]{1,0:T(1,128)}', space=vmem, size = 0x9000, scoped, tag = 'internal scratch']
  %s0 = inlined_call_operand.hbm [shape: f32[2,8,32], index: 0, kind: input, shape index: {}]
  %s1 = inlined_call_operand.hbm [shape: f32[2,1,32], index: 1, kind: input, shape index: {}]
  %s2 = inlined_call_operand.hbm [shape: f32[2,1,8], index: 2, kind: input, shape index: {}]
  %s3 = inlined_call_operand.hbm [shape: f32[2,1,32], index: 3, kind: output, shape index: {0}]
  %s4 = inlined_call_operand.hbm [shape: f32[2,1,8], index: 4, kind: output, shape index: {1}]
  %5 = xla_tuple %s3, %s4
  %s6 = sld [smem:[#allocation0]]
  $region42: #{tpu_custom_call.1} parent=0
    _
  %s8 = ssub.s32 1, %s6
  %s9 = scalar_select 0, %s8, %s6
  $region1: #{tpu_custom_call.1} parent=0
    #allocation2 [shape = 'u8[8192]{0}', space=vmem, size = 0x2000, scoped, tag = 'input window, operand 0, single buffered']
    #allocation3 [shape = 's32[1]{0}', space=sflag, size = 0x4, scoped, tag = 'scoped memory for tpu_custom_call.1']
    #allocation4 [shape = 's32[1]{0}', space=sflag, size = 0x4, scoped, tag = 'scoped memory for tpu_custom_call.1']
    #allocation5 [shape = 'u8[1024]{0}', space=vmem, size = 0x400, scoped, tag = 'input window, operand 1, single buffered']
    #allocation6 [shape = 's32[1]{0}', space=sflag, size = 0x4, scoped, tag = 'scoped memory for tpu_custom_call.1']
    #allocation7 [shape = 'u8[1024]{0}', space=vmem, size = 0x400, scoped, tag = 'input window, operand 2, single buffered']
    #allocation8 [shape = 'u8[1024]{0}', space=vmem, size = 0x400, scoped, tag = 'output window, operand 0, single buffered']
    #allocation9 [shape = 'u8[1024]{0}', space=vmem, size = 0x400, scoped, tag = 'output window, operand 1, single buffered']
    #allocation10 [shape = 's32[1]{0}', space=sflag, size = 0x4, scoped, tag = 'scoped memory for tpu_custom_call.1']
    %10 = vsyncpa [#allocation3], 0
    %11 = vsyncpa [#allocation6], 0
    %12 = vsyncpa [#allocation4], 0
    %13 = vsyncpa [#allocation10], 0
    // Predicated region
    $region2: #{tpu_custom_call.1} parent=1 // pred_check
      _
    $region3: #{tpu_custom_call.1} parent=1 // pred_check_branch
      %15 = sbr.rel (0) target = $region5
    $region4: #{tpu_custom_call.1} parent=1 // pred_region
      %17 = vsyncadd [#allocation3], 0
      %s18 = sshll.u32 %s0, 4
      %s19 = int_to_ptr.hbm [resolvable:$true] %s18
      %s20 = sshll.u32 [#allocation2], 4
      %s21 = int_to_ptr.vmem [resolvable:$true] %s20
      %26 = dma.hbm_to_vmem [thread:$0]  %s19, 256, %s21, [#allocation3], 128, 128, 8
    $region5: #{tpu_custom_call.1} parent=1 // pred_fallthru
      _
    // Predicated region
    $region6: #{tpu_custom_call.1} parent=1 // pred_check
      _
    $region7: #{tpu_custom_call.1} parent=1 // pred_check_branch
      %28 = sbr.rel (0) target = $region9
    $region8: #{tpu_custom_call.1} parent=1 // pred_region
      %30 = vsyncadd [#allocation6], 0
      %s31 = sshll.u32 %s1, 4
      %s32 = int_to_ptr.hbm [resolvable:$true] %s31
      %s33 = sshll.u32 [#allocation5], 4
      %s34 = int_to_ptr.vmem [resolvable:$true] %s33
      %39 = dma.hbm_to_vmem [thread:$0]  %s32, 32, %s34, [#allocation6], 16, 16, 1
    $region9: #{tpu_custom_call.1} parent=1 // pred_fallthru
      _
    // Predicated region
    $region10: #{tpu_custom_call.1} parent=1 // pred_check
      _
    $region11: #{tpu_custom_call.1} parent=1 // pred_check_branch
      %41 = sbr.rel (0) target = $region13
    $region12: #{tpu_custom_call.1} parent=1 // pred_region
      %43 = vsyncadd [#allocation6], 0
      %s44 = sshll.u32 %s2, 4
      %s45 = int_to_ptr.hbm [resolvable:$true] %s44
      %s46 = sshll.u32 [#allocation7], 4
      %s47 = int_to_ptr.vmem [resolvable:$true] %s46
      %52 = dma.hbm_to_vmem [thread:$0]  %s45, 32, %s47, [#allocation6], 16, 16, 1
    $region13: #{tpu_custom_call.1} parent=1 // pred_fallthru
      _
    // Predicated region
    $region14: #{tpu_custom_call.1} parent=1 // pred_check
      _
    $region15: #{tpu_custom_call.1} parent=1 // pred_check_branch
      %54 = sbr.rel (0) target = $region17
    $region16: #{tpu_custom_call.1} parent=1 // pred_region
      %56 = dma.done [#allocation3], 256
    $region17: #{tpu_custom_call.1} parent=1 // pred_fallthru
      _
    // Predicated region
    $region18: #{tpu_custom_call.1} parent=1 // pred_check
      _
    $region19: #{tpu_custom_call.1} parent=1 // pred_check_branch
      %58 = sbr.rel (0) target = $region21
    $region20: #{tpu_custom_call.1} parent=1 // pred_region
      %60 = dma.done [#allocation6], 32
    $region21: #{tpu_custom_call.1} parent=1 // pred_fallthru
      _
    // Predicated region
    $region22: #{tpu_custom_call.1} parent=1 // pred_check
      _
    $region23: #{tpu_custom_call.1} parent=1 // pred_check_branch
      %62 = sbr.rel (0) target = $region25
    $region24: #{tpu_custom_call.1} parent=1 // pred_region
      %64 = dma.done [#allocation6], 32
    $region25: #{tpu_custom_call.1} parent=1 // pred_fallthru
      _
    %v65 = vld [vmem:[#allocation2] sm:$0xff]
    %v66 = vld [vmem:[#allocation2 + $0x8] sm:$0xff]
    %v67 = vld [vmem:[#allocation5] sm:$0x1]
    %v68 = vld [vmem:[#allocation5 + $0x1] sm:$0x1]
    %v69 = vld [vmem:[#allocation7] sm:$0x1]
    %v70 = vld [vmem:[#allocation7 + $0x1] sm:$0x1]
    %vm71 = vcmask 261120
    %v73 = vsel %vm71, %v67, 0
    %v76 = vsel %vm71, %v65, 0
    %78 = vmatpush.xpose.msra.mxu0 0.0
    %79 = vmatpush.xpose.msra.mxu0 0.0
    %80 = vmatpush.xpose.msra.mxu0 0.0
    %81 = vmatpush.xpose.msra.mxu0 0.0
    %82 = vmatpush.xpose.msra.mxu0 0.0
    %83 = vmatpush.xpose.msra.mxu0 0.0
    %84 = vmatpush.xpose.msra.mxu0 0.0
    %85 = vmatpush.xpose.msra.mxu0 0.0
    %86 = vmatpush.xpose.msra.mxu0 0.0
    %87 = vmatpush.xpose.msra.mxu0 0.0
    %88 = vmatpush.xpose.msra.mxu0 0.0
    %89 = vmatpush.xpose.msra.mxu0 0.0
    %90 = vmatpush.xpose.msra.mxu0 0.0
    %91 = vmatpush.xpose.msra.mxu0 0.0
    %92 = vmatpush.xpose.msra.mxu0 0.0
    %93 = vmatpush.xpose.msra.mxu0 %v76
    %94 = vmatmul.f32.gmra.mxu0 %v73
    %v95 = vpop.f32.mrf.mxu0
    %v96 = vadd.f32 0.0, %v95
    %97 = vdwg.mxu0
    %v99 = vsel %vm71, %v68, 0
    %v102 = vsel %vm71, %v66, 0
    %104 = vmatpush.xpose.msra.mxu0 0.0
    %105 = vmatpush.xpose.msra.mxu0 0.0
    %106 = vmatpush.xpose.msra.mxu0 0.0
    %107 = vmatpush.xpose.msra.mxu0 0.0
    %108 = vmatpush.xpose.msra.mxu0 0.0
    %109 = vmatpush.xpose.msra.mxu0 0.0
    %110 = vmatpush.xpose.msra.mxu0 0.0
    %111 = vmatpush.xpose.msra.mxu0 0.0
    %112 = vmatpush.xpose.msra.mxu0 0.0
    %113 = vmatpush.xpose.msra.mxu0 0.0
    %114 = vmatpush.xpose.msra.mxu0 0.0
    %115 = vmatpush.xpose.msra.mxu0 0.0
    %116 = vmatpush.xpose.msra.mxu0 0.0
    %117 = vmatpush.xpose.msra.mxu0 0.0
    %118 = vmatpush.xpose.msra.mxu0 0.0
    %119 = vmatpush.xpose.msra.mxu0 %v102
    %120 = vmatmul.f32.gmra.mxu0 %v99
    %v121 = vpop.f32.mrf.mxu0
    %v122 = vadd.f32 0.0, %v121
    %123 = vdwg.mxu0
    %vm124 = vcmp.lt.f32.partialorder %v69, 0.0
    %vm125 = vcmp.lt.f32.partialorder %v70, 0.0
    %v126 = vsel %vm124, %v69, %v96
    %v127 = vsel %vm125, %v70, %v122
    %vm128 = vcmask 57344
    %v129 = vsel %vm128, %v126, -inf
    %130 = vmax.xlane.f32.xlu0 %v129
    %v131 = vpop.xlane.xlu0 %130
    %v132 = vsel %vm128, %v127, -inf
    %133 = vmax.xlane.f32.xlu0 %v132
    %v134 = vpop.xlane.xlu0 %133
    %v135 = vsub.f32 %v126, %v131
    %v136 = vsub.f32 %v127, %v134
    %v137 = vmul.f32 %v135, 1.442695
    %v138 = vpow.pop %v137
    %v139 = vmul.f32 %v136, 1.442695
    %v140 = vpow.pop %v139
    %v141 = vsel %vm128, %v138, 0.0
    %142 = vadd.xlane.f32.xlu0 %v141
    %v143 = vpop.xlane.xlu0 %142
    %v144 = vsel %vm128, %v140, 0.0
    %145 = vadd.xlane.f32.xlu0 %v144
    %v146 = vpop.xlane.xlu0 %145
    %v147 = vrcp.pop %v143
    %v148 = vmul.f32 %v143, %v147
    %v149 = vsub.f32 1.0, %v148
    %v150 = vmul.f32 %v147, %v149
    %v151 = vadd.f32 %v147, %v150
    %vm152 = vweird.f32 %v143
    %vm153 = vweird.f32 %v147
    %vm154 = vmor %vm152, %vm153
    %v155 = vsel %vm154, %v147, %v151
    %v156 = vand.u32 2147483647, %v143
    %vm157 = vcmp.eq.f32.partialorder %v156, 8.507059e+37
    %v158 = vand.u32 %v143, 2147483648
    %v159 = vor.u32 1.1754944e-38, %v158
    %v160 = vsel %vm157, %v159, %v155
    %v161 = vrcp.pop %v146
    %v162 = vmul.f32 %v146, %v161
    %v163 = vsub.f32 1.0, %v162
    %v164 = vmul.f32 %v161, %v163
    %v165 = vadd.f32 %v161, %v164
    %vm166 = vweird.f32 %v146
    %vm167 = vweird.f32 %v161
    %vm168 = vmor %vm166, %vm167
    %v169 = vsel %vm168, %v161, %v165
    %v170 = vand.u32 2147483647, %v146
    %vm171 = vcmp.eq.f32.partialorder %v170, 8.507059e+37
    %v172 = vand.u32 %v146, 2147483648
    %v173 = vor.u32 1.1754944e-38, %v172
    %v174 = vsel %vm171, %v173, %v169
    %v175 = vmul.f32 %v138, %v160
    %v176 = vmul.f32 %v140, %v174
    %vm177 = vcmask 64512
    %v179 = vsel %vm177, %v175, 0
    %181 = vmatpush.msra.mxu0 0.0
    %182 = vmatpush.msra.mxu0 0.0
    %183 = vmatpush.msra.mxu0 0.0
    %184 = vmatpush.msra.mxu0 0.0
    %185 = vmatpush.msra.mxu0 0.0
    %186 = vmatpush.msra.mxu0 0.0
    %187 = vmatpush.msra.mxu0 0.0
    %188 = vmatpush.msra.mxu0 0.0
    %189 = vmatpush.msra.mxu0 0.0
    %190 = vmatpush.msra.mxu0 0.0
    %191 = vmatpush.msra.mxu0 0.0
    %192 = vmatpush.msra.mxu0 0.0
    %193 = vmatpush.msra.mxu0 0.0
    %194 = vmatpush.msra.mxu0 0.0
    %195 = vmatpush.msra.mxu0 0.0
    %196 = vmatpush.msra.mxu0 %v65
    %197 = vmatmul.f32.gmra.mxu0 %v179
    %v198 = vpop.f32.mrf.mxu0
    %v199 = vadd.f32 0.0, %v198
    %200 = vdwg.mxu0
    %v202 = vsel %vm177, %v176, 0
    %204 = vmatpush.msra.mxu0 0.0
    %205 = vmatpush.msra.mxu0 0.0
    %206 = vmatpush.msra.mxu0 0.0
    %207 = vmatpush.msra.mxu0 0.0
    %208 = vmatpush.msra.mxu0 0.0
    %209 = vmatpush.msra.mxu0 0.0
    %210 = vmatpush.msra.mxu0 0.0
    %211 = vmatpush.msra.mxu0 0.0
    %212 = vmatpush.msra.mxu0 0.0
    %213 = vmatpush.msra.mxu0 0.0
    %214 = vmatpush.msra.mxu0 0.0
    %215 = vmatpush.msra.mxu0 0.0
    %216 = vmatpush.msra.mxu0 0.0
    %217 = vmatpush.msra.mxu0 0.0
    %218 = vmatpush.msra.mxu0 0.0
    %219 = vmatpush.msra.mxu0 %v66
    %220 = vmatmul.f32.gmra.mxu0 %v202
    %v221 = vpop.f32.mrf.mxu0
    %v222 = vadd.f32 0.0, %v221
    %223 = vdwg.mxu0
    %vm224 = vcmask 253952
    %225 = vst.msk [vmem:[#allocation8] sm:$0x1] %vm224, %v199
    %226 = vst.msk [vmem:[#allocation8 + $0x1] sm:$0x1] %vm224, %v222
    %227 = vst.msk [vmem:[#allocation9] sm:$0x1] %vm128, %v175
    %228 = vst.msk [vmem:[#allocation9 + $0x1] sm:$0x1] %vm128, %v176
    // Predicated region
    $region26: #{tpu_custom_call.1} parent=1 // pred_check
      _
    $region27: #{tpu_custom_call.1} parent=1 // pred_check_branch
      %230 = sbr.rel (0) target = $region29
    $region28: #{tpu_custom_call.1} parent=1 // pred_region
      %232 = vsyncadd [#allocation4], 0
      %s233 = sshll.u32 [#allocation8], 4
      %s234 = int_to_ptr.vmem [resolvable:$true] %s233
      %s235 = sshll.u32 %s3, 4
      %s236 = int_to_ptr.hbm [resolvable:$true] %s235
      %241 = dma.vmem_to_hbm [thread:$0]  %s234, 32, %s236, [#allocation4], 16, 16, 1
    $region29: #{tpu_custom_call.1} parent=1 // pred_fallthru
      _
    // Predicated region
    $region30: #{tpu_custom_call.1} parent=1 // pred_check
      _
    $region31: #{tpu_custom_call.1} parent=1 // pred_check_branch
      %243 = sbr.rel (0) target = $region33
    $region32: #{tpu_custom_call.1} parent=1 // pred_region
      %245 = vsyncadd [#allocation10], 0
      %s246 = sshll.u32 [#allocation9], 4
      %s247 = int_to_ptr.vmem [resolvable:$true] %s246
      %s248 = sshll.u32 %s4, 4
      %s249 = int_to_ptr.hbm [resolvable:$true] %s248
      %254 = dma.vmem_to_hbm [thread:$0]  %s247, 32, %s249, [#allocation10], 16, 16, 1
    $region33: #{tpu_custom_call.1} parent=1 // pred_fallthru
      _
    // Predicated region
    $region34: #{tpu_custom_call.1} parent=1 // pred_check
      _
    $region35: #{tpu_custom_call.1} parent=1 // pred_check_branch
      %256 = sbr.rel (0) target = $region37
    $region36: #{tpu_custom_call.1} parent=1 // pred_region
      %258 = dma.done [#allocation4], 32
    $region37: #{tpu_custom_call.1} parent=1 // pred_fallthru
      _
    // Predicated region
    $region38: #{tpu_custom_call.1} parent=1 // pred_check
      _
    $region39: #{tpu_custom_call.1} parent=1 // pred_check_branch
      %260 = sbr.rel (0) target = $region41
    $region40: #{tpu_custom_call.1} parent=1 // pred_region
      %262 = dma.done [#allocation10], 32
    $region41: #{tpu_custom_call.1} parent=1 // pred_fallthru
      _
    %263 = vsyncpa [#allocation3], 1
    %264 = vsyncpa [#allocation6], 1
    %265 = vsyncpa [#allocation4], 1
    %266 = vsyncpa [#allocation10], 1

</llo_original>
